<compile_context>
chip_gen: v7x
topology: tpu7x:2x2x1
jax: 0.10.0
libtpu: 0.0.40
codegen_flags: <defaults>
</compile_context>

<pallas_src>
import jax
import jax.numpy as jnp
from jax.experimental import pallas as pl
from jax.experimental.pallas import tpu as pltpu

HIDDEN = 64


def critic_kernel(s_ref, w1_ref, b1_ref, w2_ref, b2_ref, w3_ref, b3_ref, v_ref):
    # s_ref: [N_S, TB]  (batch on the lane axis)
    x = s_ref[...]
    # fc1 + tanh : [64, TB]   (MXU matmul, f32 acc; EUP tanh full-lane)
    h1 = jnp.tanh(
        jnp.dot(w1_ref[...], x, preferred_element_type=jnp.float32) + b1_ref[...]
    )
    # fc2 + tanh : [64, TB]
    h2 = jnp.tanh(
        jnp.dot(w2_ref[...], h1, preferred_element_type=jnp.float32) + b2_ref[...]
    )
    # fc3 (value head) : [1, TB]  -- lane-dense output slab
    v_ref[...] = (
        jnp.dot(w3_ref[...], h2, preferred_element_type=jnp.float32) + b3_ref[...]
    )


def critic_forward(s, params, *, tb=None):
    """s: [B, N_S] float32.  Returns values [B, 1] float32."""
    w1, b1, w2, b2, w3, b3 = params  # PyTorch layout: w [out, in], b [out, 1]
    B, n_s = s.shape

    if tb is None:
        tb = 512 if B >= 512 else 128          # lane-dense batch tile
    b_pad = pl.cdiv(B, tb) * tb

    # Transpose + zero-pad the batch once in the wrapper (layout plumbing);
    # padded columns are sliced off below.
    s_t = jnp.zeros((n_s, b_pad), jnp.float32).at[:, :B].set(
        s.astype(jnp.float32).T
    )

    grid = (b_pad // tb,)
    const = lambda i: (0, 0)                    # weights/biases VMEM-resident

    cost = pl.CostEstimate(
        flops=2 * b_pad * (n_s * HIDDEN + HIDDEN * HIDDEN + HIDDEN),
        transcendentals=2 * HIDDEN * b_pad,     # two tanh layers
        bytes_accessed=4 * (s_t.size + w1.size + b1.size + w2.size + b2.size
                            + w3.size + b3.size + b_pad),
    )

    v_t = pl.pallas_call(
        critic_kernel,
        out_shape=jax.ShapeDtypeStruct((1, b_pad), jnp.float32),
        grid_spec=pltpu.PrefetchScalarGridSpec(
            num_scalar_prefetch=0,
            grid=grid,
            in_specs=[
                pl.BlockSpec((n_s, tb), lambda i: (0, i)),   # activations, tiled on batch
                pl.BlockSpec(w1.shape, const),
                pl.BlockSpec(b1.shape, const),
                pl.BlockSpec(w2.shape, const),
                pl.BlockSpec(b2.shape, const),
                pl.BlockSpec(w3.shape, const),
                pl.BlockSpec(b3.shape, const),
            ],
            out_specs=pl.BlockSpec((1, tb), lambda i: (0, i)),
        ),
        compiler_params=pltpu.CompilerParams(
            dimension_semantics=("parallel",),   # v7x: shard batch over 2 TCs
        ),
        cost_estimate=cost,
    )(s_t, w1, b1, w2, b2, w3, b3)

    return v_t[0, :B].reshape(B, 1)


def init_critic_params(key, n_s):
    """Deterministic synthetic init matching the PyTorch Critic:
    fc1/fc2: weight ~ Normal(0, 0.1), bias = 0 (set_init);
    fc3: default Linear init scaled by 0.1, bias zeroed.
    Weights are stored in PyTorch [out, in] layout; biases as [out, 1] columns."""
    k1, k2, k3 = jax.random.split(key, 3)
    w1 = 0.1 * jax.random.normal(k1, (HIDDEN, n_s), dtype=jnp.float32)
    b1 = jnp.zeros((HIDDEN, 1), jnp.float32)
    w2 = 0.1 * jax.random.normal(k2, (HIDDEN, HIDDEN), dtype=jnp.float32)
    b2 = jnp.zeros((HIDDEN, 1), jnp.float32)
    bound = 1.0 / float(jnp.sqrt(jnp.float32(HIDDEN)))
    w3 = 0.1 * jax.random.uniform(k3, (1, HIDDEN), jnp.float32, -bound, bound)
    b3 = jnp.zeros((1, 1), jnp.float32)
    return (w1, b1, w2, b2, w3, b3)


def critic_forward_ref(s, params):
    """Pure-JAX reference for correctness check (standard [B, F] layout)."""
    w1, b1, w2, b2, w3, b3 = params
    h1 = jnp.tanh(s @ w1.T + b1.T)
    h2 = jnp.tanh(h1 @ w2.T + b2.T)
    return h2 @ w3.T + b3.T


if __name__ == "__main__":
    N_S = 16

    key = jax.random.PRNGKey(0)
    k_in, k_params, k_big = jax.random.split(key, 3)
    params = init_critic_params(k_params, N_S)

    # Small shape consistent with the module.
    B = 8
    s = jax.random.normal(k_in, (B, N_S), dtype=jnp.float32)
    v = critic_forward(s, params)
    jax.block_until_ready(v)
    v_ref = critic_forward_ref(s, params)
    assert v.shape == (B, 1)
    assert jnp.allclose(v, v_ref, atol=1e-5, rtol=1e-5)

    # Larger batch to exercise the multi-step batch grid + parallel axis.
    B2 = 1024
    s2 = jax.random.normal(k_big, (B2, N_S), dtype=jnp.float32)
    v2 = critic_forward(s2, params)
    jax.block_until_ready(v2)
    v2_ref = critic_forward_ref(s2, params)
    assert v2.shape == (B2, 1)
    assert jnp.allclose(v2, v2_ref, atol=1e-5, rtol=1e-5)

    print("KERNEL_OK")
</pallas_src>

<mosaic_0001>
module attributes {stable_mosaic.version = 11 : i64} {
  func.func @critic_kernel(%arg0: i32, %arg1: memref<16x128xf32, #tpu.memory_space<vmem>>, %arg2: memref<64x16xf32, #tpu.memory_space<vmem>>, %arg3: memref<64x1xf32, #tpu.memory_space<vmem>>, %arg4: memref<64x64xf32, #tpu.memory_space<vmem>>, %arg5: memref<64x1xf32, #tpu.memory_space<vmem>>, %arg6: memref<1x64xf32, #tpu.memory_space<vmem>>, %arg7: memref<1x1xf32, #tpu.memory_space<vmem>>, %arg8: memref<1x128xf32, #tpu.memory_space<vmem>>) attributes {dimension_semantics = [#tpu.dimension_semantics<parallel>], iteration_bounds = array<i64: 1>, scalar_prefetch = 0 : i64, scratch_operands = 0 : i64, tpu.core_type = #tpu.core_type<tc>, window_params = [{transform_indices = @transform_0, window_bounds = array<i64: 16, 128>}, {pipeline_mode = #tpu.pipeline_mode<synchronous>, transform_indices = @transform_1, window_bounds = array<i64: 64, 16>}, {pipeline_mode = #tpu.pipeline_mode<synchronous>, transform_indices = @transform_2, window_bounds = array<i64: 64, 1>}, {pipeline_mode = #tpu.pipeline_mode<synchronous>, transform_indices = @transform_3, window_bounds = array<i64: 64, 64>}, {pipeline_mode = #tpu.pipeline_mode<synchronous>, transform_indices = @transform_4, window_bounds = array<i64: 64, 1>}, {pipeline_mode = #tpu.pipeline_mode<synchronous>, transform_indices = @transform_5, window_bounds = array<i64: 1, 64>}, {pipeline_mode = #tpu.pipeline_mode<synchronous>, transform_indices = @transform_6, window_bounds = array<i64: 1, 1>}, {transform_indices = @transform_7, window_bounds = array<i64: 1, 128>}]} {
    %c0 = arith.constant 0 : index
    %c0_0 = arith.constant 0 : index
    %0 = vector.load %arg1[%c0, %c0_0] : memref<16x128xf32, #tpu.memory_space<vmem>>, vector<16x128xf32>
    %c0_1 = arith.constant 0 : index
    %c0_2 = arith.constant 0 : index
    %1 = vector.load %arg2[%c0_1, %c0_2] : memref<64x16xf32, #tpu.memory_space<vmem>>, vector<64x16xf32>
    %cst = arith.constant dense<0.000000e+00> : vector<64x128xf32>
    %2 = tpu.matmul %1, %0, %cst {dimension_numbers = #tpu.dot_dimension_numbers<[1], [0], [0], [1], [0, 0, 1, 1], [], []>} : vector<64x16xf32>, vector<16x128xf32>, vector<64x128xf32> -> vector<64x128xf32>
    %c0_3 = arith.constant 0 : index
    %c0_4 = arith.constant 0 : index
    %3 = vector.load %arg3[%c0_3, %c0_4] : memref<64x1xf32, #tpu.memory_space<vmem>>, vector<64x1xf32>
    %4 = vector.broadcast %3 : vector<64x1xf32> to vector<64x128xf32>
    %5 = arith.addf %2, %4 : vector<64x128xf32>
    %6 = math.tanh %5 : vector<64x128xf32>
    %c0_5 = arith.constant 0 : index
    %c0_6 = arith.constant 0 : index
    %7 = vector.load %arg4[%c0_5, %c0_6] : memref<64x64xf32, #tpu.memory_space<vmem>>, vector<64x64xf32>
    %cst_7 = arith.constant dense<0.000000e+00> : vector<64x128xf32>
    %8 = tpu.matmul %7, %6, %cst_7 {dimension_numbers = #tpu.dot_dimension_numbers<[1], [0], [0], [1], [0, 0, 1, 1], [], []>} : vector<64x64xf32>, vector<64x128xf32>, vector<64x128xf32> -> vector<64x128xf32>
    %c0_8 = arith.constant 0 : index
    %c0_9 = arith.constant 0 : index
    %9 = vector.load %arg5[%c0_8, %c0_9] : memref<64x1xf32, #tpu.memory_space<vmem>>, vector<64x1xf32>
    %10 = vector.broadcast %9 : vector<64x1xf32> to vector<64x128xf32>
    %11 = arith.addf %8, %10 : vector<64x128xf32>
    %12 = math.tanh %11 : vector<64x128xf32>
    %c0_10 = arith.constant 0 : index
    %c0_11 = arith.constant 0 : index
    %13 = vector.load %arg6[%c0_10, %c0_11] : memref<1x64xf32, #tpu.memory_space<vmem>>, vector<1x64xf32>
    %cst_12 = arith.constant dense<0.000000e+00> : vector<1x128xf32>
    %14 = tpu.matmul %13, %12, %cst_12 {dimension_numbers = #tpu.dot_dimension_numbers<[1], [0], [0], [1], [0, 0, 1, 1], [], []>} : vector<1x64xf32>, vector<64x128xf32>, vector<1x128xf32> -> vector<1x128xf32>
    %c0_13 = arith.constant 0 : index
    %c0_14 = arith.constant 0 : index
    %15 = vector.load %arg7[%c0_13, %c0_14] : memref<1x1xf32, #tpu.memory_space<vmem>>, vector<1x1xf32>
    %16 = vector.broadcast %15 : vector<1x1xf32> to vector<1x128xf32>
    %17 = arith.addf %14, %16 : vector<1x128xf32>
    %c0_15 = arith.constant 0 : index
    %c0_16 = arith.constant 0 : index
    %18 = vector.load %arg8[%c0_15, %c0_16] : memref<1x128xf32, #tpu.memory_space<vmem>>, vector<1x128xf32>
    tpu.vector_store %arg8[%c0_15, %c0_16], %17 {strides = array<i32>} : memref<1x128xf32, #tpu.memory_space<vmem>>, vector<1x128xf32>,
    return
  }
  func.func @transform_0(%arg0: i32) -> (i32, i32) {
    %c0_i32 = arith.constant 0 : i32
    %c0_i32_0 = arith.constant 0 : i32
    return %c0_i32, %arg0 : i32, i32
  }
  func.func @transform_1(%arg0: i32) -> (i32, i32) {
    %c0_i32 = arith.constant 0 : i32
    %c0_i32_0 = arith.constant 0 : i32
    %c0_i32_1 = arith.constant 0 : i32
    return %c0_i32, %c0_i32_0 : i32, i32
  }
  func.func @transform_2(%arg0: i32) -> (i32, i32) {
    %c0_i32 = arith.constant 0 : i32
    %c0_i32_0 = arith.constant 0 : i32
    %c0_i32_1 = arith.constant 0 : i32
    return %c0_i32, %c0_i32_0 : i32, i32
  }
  func.func @transform_3(%arg0: i32) -> (i32, i32) {
    %c0_i32 = arith.constant 0 : i32
    %c0_i32_0 = arith.constant 0 : i32
    %c0_i32_1 = arith.constant 0 : i32
    return %c0_i32, %c0_i32_0 : i32, i32
  }
  func.func @transform_4(%arg0: i32) -> (i32, i32) {
    %c0_i32 = arith.constant 0 : i32
    %c0_i32_0 = arith.constant 0 : i32
    %c0_i32_1 = arith.constant 0 : i32
    return %c0_i32, %c0_i32_0 : i32, i32
  }
  func.func @transform_5(%arg0: i32) -> (i32, i32) {
    %c0_i32 = arith.constant 0 : i32
    %c0_i32_0 = arith.constant 0 : i32
    %c0_i32_1 = arith.constant 0 : i32
    return %c0_i32, %c0_i32_0 : i32, i32
  }
  func.func @transform_6(%arg0: i32) -> (i32, i32) {
    %c0_i32 = arith.constant 0 : i32
    %c0_i32_0 = arith.constant 0 : i32
    %c0_i32_1 = arith.constant 0 : i32
    return %c0_i32, %c0_i32_0 : i32, i32
  }
  func.func @transform_7(%arg0: i32) -> (i32, i32) {
    %c0_i32 = arith.constant 0 : i32
    %c0_i32_0 = arith.constant 0 : i32
    return %c0_i32, %arg0 : i32, i32
  }
}

</mosaic_0001>

<llo_original>
// kernel: tpu_custom_call.1
$region0: #{tpu_custom_call.1}
  #allocation0 [shape = 'u32[]', space=smem, size = 0x4, offset = 0x4, fixed_abs, tag = 'smem constant byte address 0x4 - core index']
  #allocation1 [shape = 'u32[144,128]{1,0:T(1,128)}', space=vmem, size = 0x12000, scoped, tag = 'internal scratch']
  #allocation2 [shape = 'f32[1,1]{1,0:T(1,128)S(1)}', space=vmem, size = 0x200, scoped, tag = 'scoped memory for tpu_custom_call.1']
  %s0 = inlined_call_operand.vmem [shape: f32[16,128], index: 0, kind: input, shape index: {}]
  %s1 = inlined_call_operand.vmem [shape: f32[64,16], index: 1, kind: input, shape index: {}]
  %s2 = inlined_call_operand.vmem [shape: f32[64,1], index: 2, kind: input, shape index: {}]
  %s3 = inlined_call_operand.vmem [shape: f32[64,64], index: 3, kind: input, shape index: {}]
  %s4 = inlined_call_operand.vmem [shape: f32[64,1], index: 4, kind: input, shape index: {}]
  %s5 = inlined_call_operand.vmem [shape: f32[1,64], index: 5, kind: input, shape index: {}]
  %s6 = inlined_call_operand.<no memory space> [shape: f32[1,1], index: 6, kind: input, shape index: {}]
  %s7 = inlined_call_operand.hbm [shape: f32[1,128], index: 7, kind: output, shape index: {}]
  %s8 = sld [smem:[#allocation0]]
  $region38: #{tpu_custom_call.1} parent=0
    _
  %s10 = ssub.s32 1, %s8
  %s11 = scalar_select 0, %s10, %s8
  %v12 = vstv %s6
  %13 = vst [vmem:[#allocation2] sm:$0x1] %v12
  $region1: #{tpu_custom_call.1} parent=0
    #allocation3 [shape = 'u8[512]{0}', space=vmem, size = 0x400, scoped, tag = 'output window, operand 0, single buffered']
    #allocation4 [shape = 's32[1]{0}', space=sflag, size = 0x4, scoped, tag = 'scoped memory for tpu_custom_call.1']
    %14 = vsyncpa [#allocation4], 0
    // Predicated region
    $region2: #{tpu_custom_call.1} parent=1 // pred_check
      _
    $region3: #{tpu_custom_call.1} parent=1 // pred_check_branch
      %16 = sbr.rel (0) target = $region5
    $region4: #{tpu_custom_call.1} parent=1 // pred_region
      _
    $region5: #{tpu_custom_call.1} parent=1 // pred_fallthru
      _
    // Predicated region
    $region6: #{tpu_custom_call.1} parent=1 // pred_check
      _
    $region7: #{tpu_custom_call.1} parent=1 // pred_check_branch
      %18 = sbr.rel (0) target = $region9
    $region8: #{tpu_custom_call.1} parent=1 // pred_region
      _
    $region9: #{tpu_custom_call.1} parent=1 // pred_fallthru
      _
    // Predicated region
    $region10: #{tpu_custom_call.1} parent=1 // pred_check
      _
    $region11: #{tpu_custom_call.1} parent=1 // pred_check_branch
      %20 = sbr.rel (0) target = $region13
    $region12: #{tpu_custom_call.1} parent=1 // pred_region
      _
    $region13: #{tpu_custom_call.1} parent=1 // pred_fallthru
      _
    // Predicated region
    $region14: #{tpu_custom_call.1} parent=1 // pred_check
      _
    $region15: #{tpu_custom_call.1} parent=1 // pred_check_branch
      %22 = sbr.rel (0) target = $region17
    $region16: #{tpu_custom_call.1} parent=1 // pred_region
      _
    $region17: #{tpu_custom_call.1} parent=1 // pred_fallthru
      _
    // Predicated region
    $region18: #{tpu_custom_call.1} parent=1 // pred_check
      _
    $region19: #{tpu_custom_call.1} parent=1 // pred_check_branch
      %24 = sbr.rel (0) target = $region21
    $region20: #{tpu_custom_call.1} parent=1 // pred_region
      _
    $region21: #{tpu_custom_call.1} parent=1 // pred_fallthru
      _
    // Predicated region
    $region22: #{tpu_custom_call.1} parent=1 // pred_check
      _
    $region23: #{tpu_custom_call.1} parent=1 // pred_check_branch
      %26 = sbr.rel (0) target = $region25
    $region24: #{tpu_custom_call.1} parent=1 // pred_region
      _
    $region25: #{tpu_custom_call.1} parent=1 // pred_fallthru
      _
    // Predicated region
    $region26: #{tpu_custom_call.1} parent=1 // pred_check
      _
    $region27: #{tpu_custom_call.1} parent=1 // pred_check_branch
      %28 = sbr.rel (0) target = $region29
    $region28: #{tpu_custom_call.1} parent=1 // pred_region
      _
    $region29: #{tpu_custom_call.1} parent=1 // pred_fallthru
      _
    %v29 = vld [vmem:[%s0] sm:$0xff]
    %v30 = vld [vmem:[%s0 + $0x8] sm:$0xff]
    %v31 = vld [vmem:[%s1] sm:$0xff]
    %v32 = vld [vmem:[%s1 + $0x8] sm:$0xff]
    %v33 = vld [vmem:[%s1 + $0x10] sm:$0xff]
    %v34 = vld [vmem:[%s1 + $0x18] sm:$0xff]
    %v35 = vld [vmem:[%s1 + $0x20] sm:$0xff]
    %v36 = vld [vmem:[%s1 + $0x28] sm:$0xff]
    %v37 = vld [vmem:[%s1 + $0x30] sm:$0xff]
    %v38 = vld [vmem:[%s1 + $0x38] sm:$0xff]
    %v39 = vld [vmem:[%s2] sm:$0xff]
    %v40 = vld [vmem:[%s2 + $0x8] sm:$0xff]
    %v41 = vld [vmem:[%s2 + $0x10] sm:$0xff]
    %v42 = vld [vmem:[%s2 + $0x18] sm:$0xff]
    %v43 = vld [vmem:[%s2 + $0x20] sm:$0xff]
    %v44 = vld [vmem:[%s2 + $0x28] sm:$0xff]
    %v45 = vld [vmem:[%s2 + $0x30] sm:$0xff]
    %v46 = vld [vmem:[%s2 + $0x38] sm:$0xff]
    %48 = vset.pattern.permute.xlu0 0
    %49 = vperm.xlu0 %48, %v39
    %v50 = vpop.permute.xlu0 %49
    %53 = vset.pattern.permute.xlu0 0
    %54 = vperm.xlu0 %53, %v40
    %v55 = vpop.permute.xlu0 %54
    %58 = vset.pattern.permute.xlu0 0
    %59 = vperm.xlu0 %58, %v41
    %v60 = vpop.permute.xlu0 %59
    %63 = vset.pattern.permute.xlu0 0
    %64 = vperm.xlu0 %63, %v42
    %v65 = vpop.permute.xlu0 %64
    %68 = vset.pattern.permute.xlu0 0
    %69 = vperm.xlu0 %68, %v43
    %v70 = vpop.permute.xlu0 %69
    %73 = vset.pattern.permute.xlu0 0
    %74 = vperm.xlu0 %73, %v44
    %v75 = vpop.permute.xlu0 %74
    %78 = vset.pattern.permute.xlu0 0
    %79 = vperm.xlu0 %78, %v45
    %v80 = vpop.permute.xlu0 %79
    %83 = vset.pattern.permute.xlu0 0
    %84 = vperm.xlu0 %83, %v46
    %v85 = vpop.permute.xlu0 %84
    %vm87 = vcmask 130048
    %v89 = vsel %vm87, %v31, 0
    %v92 = vsel %vm87, %v32, 0
    %v95 = vsel %vm87, %v33, 0
    %v98 = vsel %vm87, %v34, 0
    %v101 = vsel %vm87, %v35, 0
    %v104 = vsel %vm87, %v36, 0
    %v107 = vsel %vm87, %v37, 0
    %v110 = vsel %vm87, %v38, 0
    %112 = vmatprep.subr.mxu0 0.0
    %113 = vmatpush1.msra.mxu0 %v29
    %114 = vmatprep.subr.mxu0 0.0
    %115 = vmatpush1.msra.mxu0 %v30
    %116 = vmatprep.subr.mxu0 0.0
    %117 = vmatpush1.msra.mxu0 0.0
    %118 = vmatprep.subr.mxu0 0.0
    %119 = vmatpush1.msra.mxu0 0.0
    %120 = vmatprep.subr.mxu0 0.0
    %121 = vmatpush1.msra.mxu0 0.0
    %122 = vmatprep.subr.mxu0 0.0
    %123 = vmatpush1.msra.mxu0 0.0
    %124 = vmatprep.subr.mxu0 0.0
    %125 = vmatpush1.msra.mxu0 0.0
    %126 = vmatprep.subr.mxu0 0.0
    %127 = vmatpush1.msra.mxu0 0.0
    %128 = vmatprep.subr.mxu0 0.0
    %129 = vmatpush1.msra.mxu0 0.0
    %130 = vmatprep.subr.mxu0 0.0
    %131 = vmatpush1.msra.mxu0 0.0
    %132 = vmatprep.subr.mxu0 0.0
    %133 = vmatpush1.msra.mxu0 0.0
    %134 = vmatprep.subr.mxu0 0.0
    %135 = vmatpush1.msra.mxu0 0.0
    %136 = vmatprep.subr.mxu0 0.0
    %137 = vmatpush1.msra.mxu0 0.0
    %138 = vmatprep.subr.mxu0 0.0
    %139 = vmatpush1.msra.mxu0 0.0
    %140 = vmatprep.subr.mxu0 0.0
    %141 = vmatpush1.msra.mxu0 0.0
    %142 = vmatprep.subr.mxu0 0.0
    %143 = vmatpush1.msra.mxu0 0.0
    %144 = vmatprep.subr.mxu0 0.0
    %145 = vmatpush1.msra.mxu0 0.0
    %146 = vmatprep.subr.mxu0 0.0
    %147 = vmatpush1.msra.mxu0 0.0
    %148 = vmatprep.subr.mxu0 0.0
    %149 = vmatpush1.msra.mxu0 0.0
    %150 = vmatprep.subr.mxu0 0.0
    %151 = vmatpush1.msra.mxu0 0.0
    %152 = vmatprep.subr.mxu0 0.0
    %153 = vmatpush1.msra.mxu0 0.0
    %154 = vmatprep.subr.mxu0 0.0
    %155 = vmatpush1.msra.mxu0 0.0
    %156 = vmatprep.subr.mxu0 0.0
    %157 = vmatpush1.msra.mxu0 0.0
    %158 = vmatprep.subr.mxu0 0.0
    %159 = vmatpush1.msra.mxu0 0.0
    %160 = vmatprep.subr.mxu0 0.0
    %161 = vmatpush1.msra.mxu0 0.0
    %162 = vmatprep.subr.mxu0 0.0
    %163 = vmatpush1.msra.mxu0 0.0
    %164 = vmatprep.subr.mxu0 0.0
    %165 = vmatpush1.msra.mxu0 0.0
    %166 = vmatprep.subr.mxu0 0.0
    %167 = vmatpush1.msra.mxu0 0.0
    %168 = vmatprep.subr.mxu0 0.0
    %169 = vmatpush1.msra.mxu0 0.0
    %170 = vmatprep.subr.mxu0 0.0
    %171 = vmatpush1.msra.mxu0 0.0
    %172 = vmatprep.subr.mxu0 0.0
    %173 = vmatpush1.msra.mxu0 0.0
    %174 = vmatprep.subr.mxu0 0.0
    %175 = vmatpush1.msra.mxu0 0.0
    %176 = vmatprep.mubr.f32.mxu0 0.0
    %177 = vmatmul.mubr.f32.gmra.mrb[0].mxu0 %v89
    %v178 = vpop.f32.mrb[0].mxu0
    %v179 = vadd.f32 %v50, %v178
    %v180 = vpop.f32.mrb[0].mxu0
    %181 = vmatprep.mubr.f32.mxu0 0.0
    %182 = vmatmul.mubr.f32.gmra.mrb[0].mxu0 %v92
    %v183 = vpop.f32.mrb[0].mxu0
    %v184 = vadd.f32 %v55, %v183
    %v185 = vpop.f32.mrb[0].mxu0
    %186 = vmatprep.mubr.f32.mxu0 0.0
    %187 = vmatmul.mubr.f32.gmra.mrb[0].mxu0 %v95
    %v188 = vpop.f32.mrb[0].mxu0
    %v189 = vadd.f32 %v60, %v188
    %v190 = vpop.f32.mrb[0].mxu0
    %191 = vmatprep.mubr.f32.mxu0 0.0
    %192 = vmatmul.mubr.f32.gmra.mrb[0].mxu0 %v98
    %v193 = vpop.f32.mrb[0].mxu0
    %v194 = vadd.f32 %v65, %v193
    %v195 = vpop.f32.mrb[0].mxu0
    %196 = vmatprep.mubr.f32.mxu0 0.0
    %197 = vmatmul.mubr.f32.gmra.mrb[0].mxu0 %v101
    %v198 = vpop.f32.mrb[0].mxu0
    %v199 = vadd.f32 %v70, %v198
    %v200 = vpop.f32.mrb[0].mxu0
    %201 = vmatprep.mubr.f32.mxu0 0.0
    %202 = vmatmul.mubr.f32.gmra.mrb[0].mxu0 %v104
    %v203 = vpop.f32.mrb[0].mxu0
    %v204 = vadd.f32 %v75, %v203
    %v205 = vpop.f32.mrb[0].mxu0
    %206 = vmatprep.mubr.f32.mxu0 0.0
    %207 = vmatmul.mubr.f32.gmra.mrb[0].mxu0 %v107
    %v208 = vpop.f32.mrb[0].mxu0
    %v209 = vadd.f32 %v80, %v208
    %v210 = vpop.f32.mrb[0].mxu0
    %211 = vmatprep.mubr.f32.mxu0 0.0
    %212 = vmatmul.mubr.f32.gmra.mrb[0].mxu0 %v110
    %v213 = vpop.f32.mrb[0].mxu0
    %v214 = vadd.f32 %v85, %v213
    %v215 = vpop.f32.mrb[0].mxu0
    %216 = vdwg.mxu0
    %v217 = vtanh.pop %v179
    %v218 = vtanh.pop %v184
    %v219 = vtanh.pop %v189
    %v220 = vtanh.pop %v194
    %v221 = vtanh.pop %v199
    %v222 = vtanh.pop %v204
    %v223 = vtanh.pop %v209
    %v224 = vtanh.pop %v214
    %v225 = vld [vmem:[%s3] sm:$0xff]
    %v226 = vld [vmem:[%s3 + $0x8] sm:$0xff]
    %v227 = vld [vmem:[%s3 + $0x10] sm:$0xff]
    %v228 = vld [vmem:[%s3 + $0x18] sm:$0xff]
    %v229 = vld [vmem:[%s3 + $0x20] sm:$0xff]
    %v230 = vld [vmem:[%s3 + $0x28] sm:$0xff]
    %v231 = vld [vmem:[%s3 + $0x30] sm:$0xff]
    %v232 = vld [vmem:[%s3 + $0x38] sm:$0xff]
    %v233 = vld [vmem:[%s4] sm:$0xff]
    %v234 = vld [vmem:[%s4 + $0x8] sm:$0xff]
    %v235 = vld [vmem:[%s4 + $0x10] sm:$0xff]
    %v236 = vld [vmem:[%s4 + $0x18] sm:$0xff]
    %v237 = vld [vmem:[%s4 + $0x20] sm:$0xff]
    %v238 = vld [vmem:[%s4 + $0x28] sm:$0xff]
    %v239 = vld [vmem:[%s4 + $0x30] sm:$0xff]
    %v240 = vld [vmem:[%s4 + $0x38] sm:$0xff]
    %242 = vset.pattern.permute.xlu0 0
    %243 = vperm.xlu0 %242, %v233
    %v244 = vpop.permute.xlu0 %243
    %247 = vset.pattern.permute.xlu0 0
    %248 = vperm.xlu0 %247, %v234
    %v249 = vpop.permute.xlu0 %248
    %252 = vset.pattern.permute.xlu0 0
    %253 = vperm.xlu0 %252, %v235
    %v254 = vpop.permute.xlu0 %253
    %257 = vset.pattern.permute.xlu0 0
    %258 = vperm.xlu0 %257, %v236
    %v259 = vpop.permute.xlu0 %258
    %262 = vset.pattern.permute.xlu0 0
    %263 = vperm.xlu0 %262, %v237
    %v264 = vpop.permute.xlu0 %263
    %267 = vset.pattern.permute.xlu0 0
    %268 = vperm.xlu0 %267, %v238
    %v269 = vpop.permute.xlu0 %268
    %272 = vset.pattern.permute.xlu0 0
    %273 = vperm.xlu0 %272, %v239
    %v274 = vpop.permute.xlu0 %273
    %277 = vset.pattern.permute.xlu0 0
    %278 = vperm.xlu0 %277, %v240
    %v279 = vpop.permute.xlu0 %278
    %vm281 = vcmask 523264
    %v283 = vsel %vm281, %v225, 0
    %v286 = vsel %vm281, %v226, 0
    %v289 = vsel %vm281, %v227, 0
    %v292 = vsel %vm281, %v228, 0
    %v295 = vsel %vm281, %v229, 0
    %v298 = vsel %vm281, %v230, 0
    %v301 = vsel %vm281, %v231, 0
    %v304 = vsel %vm281, %v232, 0
    %306 = vmatprep.subr.mxu0 0.0
    %307 = vmatpush1.msra.mxu0 %v217
    %308 = vmatprep.subr.mxu0 0.0
    %309 = vmatpush1.msra.mxu0 %v218
    %310 = vmatprep.subr.mxu0 0.0
    %311 = vmatpush1.msra.mxu0 %v219
    %312 = vmatprep.subr.mxu0 0.0
    %313 = vmatpush1.msra.mxu0 %v220
    %314 = vmatprep.subr.mxu0 0.0
    %315 = vmatpush1.msra.mxu0 %v221
    %316 = vmatprep.subr.mxu0 0.0
    %317 = vmatpush1.msra.mxu0 %v222
    %318 = vmatprep.subr.mxu0 0.0
    %319 = vmatpush1.msra.mxu0 %v223
    %320 = vmatprep.subr.mxu0 0.0
    %321 = vmatpush1.msra.mxu0 %v224
    %322 = vmatprep.subr.mxu0 0.0
    %323 = vmatpush1.msra.mxu0 0.0
    %324 = vmatprep.subr.mxu0 0.0
    %325 = vmatpush1.msra.mxu0 0.0
    %326 = vmatprep.subr.mxu0 0.0
    %327 = vmatpush1.msra.mxu0 0.0
    %328 = vmatprep.subr.mxu0 0.0
    %329 = vmatpush1.msra.mxu0 0.0
    %330 = vmatprep.subr.mxu0 0.0
    %331 = vmatpush1.msra.mxu0 0.0
    %332 = vmatprep.subr.mxu0 0.0
    %333 = vmatpush1.msra.mxu0 0.0
    %334 = vmatprep.subr.mxu0 0.0
    %335 = vmatpush1.msra.mxu0 0.0
    %336 = vmatprep.subr.mxu0 0.0
    %337 = vmatpush1.msra.mxu0 0.0
    %338 = vmatprep.subr.mxu0 0.0
    %339 = vmatpush1.msra.mxu0 0.0
    %340 = vmatprep.subr.mxu0 0.0
    %341 = vmatpush1.msra.mxu0 0.0
    %342 = vmatprep.subr.mxu0 0.0
    %343 = vmatpush1.msra.mxu0 0.0
    %344 = vmatprep.subr.mxu0 0.0
    %345 = vmatpush1.msra.mxu0 0.0
    %346 = vmatprep.subr.mxu0 0.0
    %347 = vmatpush1.msra.mxu0 0.0
    %348 = vmatprep.subr.mxu0 0.0
    %349 = vmatpush1.msra.mxu0 0.0
    %350 = vmatprep.subr.mxu0 0.0
    %351 = vmatpush1.msra.mxu0 0.0
    %352 = vmatprep.subr.mxu0 0.0
    %353 = vmatpush1.msra.mxu0 0.0
    %354 = vmatprep.subr.mxu0 0.0
    %355 = vmatpush1.msra.mxu0 0.0
    %356 = vmatprep.subr.mxu0 0.0
    %357 = vmatpush1.msra.mxu0 0.0
    %358 = vmatprep.subr.mxu0 0.0
    %359 = vmatpush1.msra.mxu0 0.0
    %360 = vmatprep.subr.mxu0 0.0
    %361 = vmatpush1.msra.mxu0 0.0
    %362 = vmatprep.subr.mxu0 0.0
    %363 = vmatpush1.msra.mxu0 0.0
    %364 = vmatprep.subr.mxu0 0.0
    %365 = vmatpush1.msra.mxu0 0.0
    %366 = vmatprep.subr.mxu0 0.0
    %367 = vmatpush1.msra.mxu0 0.0
    %368 = vmatprep.subr.mxu0 0.0
    %369 = vmatpush1.msra.mxu0 0.0
    %370 = vmatprep.mubr.f32.mxu0 0.0
    %371 = vmatmul.mubr.f32.gmra.mrb[0].mxu0 %v283
    %v372 = vpop.f32.mrb[0].mxu0
    %v373 = vadd.f32 %v244, %v372
    %v374 = vpop.f32.mrb[0].mxu0
    %375 = vmatprep.mubr.f32.mxu0 0.0
    %376 = vmatmul.mubr.f32.gmra.mrb[0].mxu0 %v286
    %v377 = vpop.f32.mrb[0].mxu0
    %v378 = vadd.f32 %v249, %v377
    %v379 = vpop.f32.mrb[0].mxu0
    %380 = vmatprep.mubr.f32.mxu0 0.0
    %381 = vmatmul.mubr.f32.gmra.mrb[0].mxu0 %v289
    %v382 = vpop.f32.mrb[0].mxu0
    %v383 = vadd.f32 %v254, %v382
    %v384 = vpop.f32.mrb[0].mxu0
    %385 = vmatprep.mubr.f32.mxu0 0.0
    %386 = vmatmul.mubr.f32.gmra.mrb[0].mxu0 %v292
    %v387 = vpop.f32.mrb[0].mxu0
    %v388 = vadd.f32 %v259, %v387
    %v389 = vpop.f32.mrb[0].mxu0
    %390 = vmatprep.mubr.f32.mxu0 0.0
    %391 = vmatmul.mubr.f32.gmra.mrb[0].mxu0 %v295
    %v392 = vpop.f32.mrb[0].mxu0
    %v393 = vadd.f32 %v264, %v392
    %v394 = vpop.f32.mrb[0].mxu0
    %395 = vmatprep.mubr.f32.mxu0 0.0
    %396 = vmatmul.mubr.f32.gmra.mrb[0].mxu0 %v298
    %v397 = vpop.f32.mrb[0].mxu0
    %v398 = vadd.f32 %v269, %v397
    %v399 = vpop.f32.mrb[0].mxu0
    %400 = vmatprep.mubr.f32.mxu0 0.0
    %401 = vmatmul.mubr.f32.gmra.mrb[0].mxu0 %v301
    %v402 = vpop.f32.mrb[0].mxu0
    %v403 = vadd.f32 %v274, %v402
    %v404 = vpop.f32.mrb[0].mxu0
    %405 = vmatprep.mubr.f32.mxu0 0.0
    %406 = vmatmul.mubr.f32.gmra.mrb[0].mxu0 %v304
    %v407 = vpop.f32.mrb[0].mxu0
    %v408 = vadd.f32 %v279, %v407
    %v409 = vpop.f32.mrb[0].mxu0
    %410 = vdwg.mxu0
    %v411 = vtanh.pop %v373
    %v412 = vtanh.pop %v378
    %v413 = vtanh.pop %v383
    %v414 = vtanh.pop %v388
    %v415 = vtanh.pop %v393
    %v416 = vtanh.pop %v398
    %v417 = vtanh.pop %v403
    %v418 = vtanh.pop %v408
    %v419 = vld [vmem:[%s5] sm:$0x1]
    %v420 = vld [vmem:[#allocation2] sm:$0x1]
    %422 = vset.pattern.permute.xlu0 0
    %423 = vperm.xlu0 %422, %v420
    %v424 = vpop.permute.xlu0 %423
    %v426 = vlaneseq
    %v427 = vshrl.u32 %v426, 7
    %v428 = vsub.s32 0, %v427
    %v429 = vrot.slane %v424, %v428
    %v431 = vsel %vm281, %v419, 0
    %433 = vmatprep.subr.mxu0 0.0
    %434 = vmatpush1.msra.mxu0 %v411
    %435 = vmatprep.subr.mxu0 0.0
    %436 = vmatpush1.msra.mxu0 %v412
    %437 = vmatprep.subr.mxu0 0.0
    %438 = vmatpush1.msra.mxu0 %v413
    %439 = vmatprep.subr.mxu0 0.0
    %440 = vmatpush1.msra.mxu0 %v414
    %441 = vmatprep.subr.mxu0 0.0
    %442 = vmatpush1.msra.mxu0 %v415
    %443 = vmatprep.subr.mxu0 0.0
    %444 = vmatpush1.msra.mxu0 %v416
    %445 = vmatprep.subr.mxu0 0.0
    %446 = vmatpush1.msra.mxu0 %v417
    %447 = vmatprep.subr.mxu0 0.0
    %448 = vmatpush1.msra.mxu0 %v418
    %449 = vmatprep.subr.mxu0 0.0
    %450 = vmatpush1.msra.mxu0 0.0
    %451 = vmatprep.subr.mxu0 0.0
    %452 = vmatpush1.msra.mxu0 0.0
    %453 = vmatprep.subr.mxu0 0.0
    %454 = vmatpush1.msra.mxu0 0.0
    %455 = vmatprep.subr.mxu0 0.0
    %456 = vmatpush1.msra.mxu0 0.0
    %457 = vmatprep.subr.mxu0 0.0
    %458 = vmatpush1.msra.mxu0 0.0
    %459 = vmatprep.subr.mxu0 0.0
    %460 = vmatpush1.msra.mxu0 0.0
    %461 = vmatprep.subr.mxu0 0.0
    %462 = vmatpush1.msra.mxu0 0.0
    %463 = vmatprep.subr.mxu0 0.0
    %464 = vmatpush1.msra.mxu0 0.0
    %465 = vmatprep.subr.mxu0 0.0
    %466 = vmatpush1.msra.mxu0 0.0
    %467 = vmatprep.subr.mxu0 0.0
    %468 = vmatpush1.msra.mxu0 0.0
    %469 = vmatprep.subr.mxu0 0.0
    %470 = vmatpush1.msra.mxu0 0.0
    %471 = vmatprep.subr.mxu0 0.0
    %472 = vmatpush1.msra.mxu0 0.0
    %473 = vmatprep.subr.mxu0 0.0
    %474 = vmatpush1.msra.mxu0 0.0
    %475 = vmatprep.subr.mxu0 0.0
    %476 = vmatpush1.msra.mxu0 0.0
    %477 = vmatprep.subr.mxu0 0.0
    %478 = vmatpush1.msra.mxu0 0.0
    %479 = vmatprep.subr.mxu0 0.0
    %480 = vmatpush1.msra.mxu0 0.0
    %481 = vmatprep.subr.mxu0 0.0
    %482 = vmatpush1.msra.mxu0 0.0
    %483 = vmatprep.subr.mxu0 0.0
    %484 = vmatpush1.msra.mxu0 0.0
    %485 = vmatprep.subr.mxu0 0.0
    %486 = vmatpush1.msra.mxu0 0.0
    %487 = vmatprep.subr.mxu0 0.0
    %488 = vmatpush1.msra.mxu0 0.0
    %489 = vmatprep.subr.mxu0 0.0
    %490 = vmatpush1.msra.mxu0 0.0
    %491 = vmatprep.subr.mxu0 0.0
    %492 = vmatpush1.msra.mxu0 0.0
    %493 = vmatprep.subr.mxu0 0.0
    %494 = vmatpush1.msra.mxu0 0.0
    %495 = vmatprep.subr.mxu0 0.0
    %496 = vmatpush1.msra.mxu0 0.0
    %497 = vmatprep.mubr.f32.mxu0 0.0
    %498 = vmatmul.mubr.f32.gmra.mrb[0].mxu0 %v431
    %v499 = vpop.f32.mrb[0].mxu0
    %v500 = vadd.f32 %v429, %v499
    %v501 = vpop.f32.mrb[0].mxu0
    %502 = vdwg.mxu0
    %503 = vst [vmem:[#allocation3] sm:$0x1] %v500
    // Predicated region
    $region30: #{tpu_custom_call.1} parent=1 // pred_check
      _
    $region31: #{tpu_custom_call.1} parent=1 // pred_check_branch
      %505 = sbr.rel (0) target = $region33
    $region32: #{tpu_custom_call.1} parent=1 // pred_region
      %s507 = ssub.s32 16, 16
      %508 = vsyncadd [#allocation4], %s507
      %s510 = sshll.u32 [#allocation3], 4
      %s511 = int_to_ptr.vmem [resolvable:$true] %s510
      %513 = dma.vmem_to_hbm [thread:$0]  %s511, 16, %s7, [#allocation4]
    $region33: #{tpu_custom_call.1} parent=1 // pred_fallthru
      _
    // Predicated region
    $region34: #{tpu_custom_call.1} parent=1 // pred_check
      _
    $region35: #{tpu_custom_call.1} parent=1 // pred_check_branch
      %515 = sbr.rel (0) target = $region37
    $region36: #{tpu_custom_call.1} parent=1 // pred_region
      %516 = dma.done [#allocation4], 16
    $region37: #{tpu_custom_call.1} parent=1 // pred_fallthru
      _
    %517 = vsyncpa [#allocation4], 1

</llo_original>
